<compile_context>
chip_gen: v7x
topology: tpu7x:2x2x1
jax: 0.10.0
libtpu: 0.0.40
codegen_flags: <defaults>
</compile_context>

<pallas_src>
import functools

import jax
import jax.numpy as jnp
from jax.experimental import pallas as pl
from jax.experimental.pallas import tpu as pltpu


def _maxpool_kernel(x_ref, o_ref, *, k, H, W, OH, OW):
    """x_ref: (T_B, H, W) input block; o_ref: (T_B, OH, OW) output block."""
    x = x_ref[...]  # one load of the whole block

    # H-direction window max: for each output row, max over its (<= k) valid
    # input rows as one full-width slab (single-axis sublane reduce, no 4-D
    # multi-axis reduce).  The min(.., H) clamp implements ceil_mode's partial
    # last window exactly (max over valid elements only).
    rows = []
    for r in range(OH):
        r0 = r * k
        r1 = min(r0 + k, H)
        rows.append(jnp.max(x[:, r0:r1, :], axis=1, keepdims=True))   # (T_B,1,W)
    h = rows[0] if OH == 1 else jnp.concatenate(rows, axis=1)         # (T_B,OH,W)

    # W-direction window max: per output column a small lane-window reduce,
    # again clamping the partial last window.
    cols = []
    for c in range(OW):
        c0 = c * k
        c1 = min(c0 + k, W)
        cols.append(jnp.max(h[:, :, c0:c1], axis=2, keepdims=True))   # (T_B,OH,1)
    out = cols[0] if OW == 1 else jnp.concatenate(cols, axis=2)       # (T_B,OH,OW)

    # One large store for the whole output block (no per-window masked stores;
    # the HBM writeback is a single contiguous DMA handled by the pipeline).
    o_ref[...] = out.astype(o_ref.dtype)


def maxpool2d_k3_ceil(x_nchw, *, block_vmem_budget_bytes=4 * 1024 * 1024):
    """MaxPool2d(kernel_size=3, stride=3, padding=0, ceil_mode=True) on NCHW."""
    N, C, H, W = x_nchw.shape
    k = 3
    OH = -(-H // k)   # ceil division (ceil_mode=True, stride == kernel, pad 0)
    OW = -(-W // k)
    B = N * C

    # Free reshape: pooling is independent per (n, c) plane.
    x = x_nchw.reshape(B, H, W)

    # Pick the plane tile so one (input + output) block pair stays well inside
    # scoped VMEM with double buffering on every TPU generation.
    itemsize = jnp.dtype(x_nchw.dtype).itemsize
    bytes_per_plane = (H * W + OH * OW) * itemsize
    t_b = max(1, min(B, block_vmem_budget_bytes // max(1, bytes_per_plane)))

    out = pl.pallas_call(
        functools.partial(_maxpool_kernel, k=k, H=H, W=W, OH=OH, OW=OW),
        out_shape=jax.ShapeDtypeStruct((B, OH, OW), x_nchw.dtype),
        grid=(pl.cdiv(B, t_b),),
        in_specs=[pl.BlockSpec((t_b, H, W), lambda b: (b, 0, 0))],
        out_specs=pl.BlockSpec((t_b, OH, OW), lambda b: (b, 0, 0)),
        compiler_params=pltpu.CompilerParams(
            dimension_semantics=("parallel",),      # v7x: shard planes on both TCs
            vmem_limit_bytes=32 * 1024 * 1024,      # raise v5e's 16 MiB default
        ),
    )(x)

    return out.reshape(N, C, OH, OW)


def _reference_maxpool(x_nchw):
    """Pure-JAX reference (reduce_window) matching MaxPool2d(3, ceil_mode=True)."""
    N, C, H, W = x_nchw.shape
    k = s = 3
    OH = -(-H // s)
    OW = -(-W // s)
    return jax.lax.reduce_window(
        x_nchw,
        -jnp.inf,
        jax.lax.max,
        window_dimensions=(1, 1, k, k),
        window_strides=(1, 1, s, s),
        padding=((0, 0), (0, 0), (0, OH * s - H), (0, OW * s - W)),
    )


if __name__ == "__main__":
    key = jax.random.PRNGKey(0)
    # Small NCHW input consistent with the MaxPool2d forward pass.
    x = jax.random.normal(key, (2, 4, 16, 16), dtype=jnp.float32)

    out = maxpool2d_k3_ceil(x)
    out = jax.block_until_ready(out)

    ref = _reference_maxpool(x)
    assert out.shape == (2, 4, 6, 6), out.shape
    assert jnp.allclose(out, ref), "Pallas maxpool output does not match reference"

    print("KERNEL_OK")
</pallas_src>

<mosaic_0001>
module attributes {stable_mosaic.version = 11 : i64} {
  func.func @_maxpool_kernel(%arg0: i32, %arg1: memref<8x16x16xf32, #tpu.memory_space<vmem>>, %arg2: memref<8x6x6xf32, #tpu.memory_space<vmem>>) attributes {dimension_semantics = [#tpu.dimension_semantics<parallel>], iteration_bounds = array<i64: 1>, scalar_prefetch = 0 : i64, scratch_operands = 0 : i64, tpu.core_type = #tpu.core_type<tc>, window_params = [{transform_indices = @transform_0, window_bounds = array<i64: 8, 16, 16>}, {transform_indices = @transform_1, window_bounds = array<i64: 8, 6, 6>}]} {
    %c0 = arith.constant 0 : index
    %c0_0 = arith.constant 0 : index
    %c0_1 = arith.constant 0 : index
    %0 = vector.load %arg1[%c0, %c0_0, %c0_1] : memref<8x16x16xf32, #tpu.memory_space<vmem>>, vector<8x16x16xf32>
    %1 = vector.extract_strided_slice %0 {offsets = [0, 0, 0], sizes = [8, 3, 16], strides = [1, 1, 1]} : vector<8x16x16xf32> to vector<8x3x16xf32>
    %cst = arith.constant dense<0xFF800000> : vector<8x16xf32>
    %2 = vector.multi_reduction <maximumf>, %1, %cst [1] : vector<8x3x16xf32> to vector<8x16xf32>
    %3 = vector.shape_cast %2 : vector<8x16xf32> to vector<8x1x16xf32>
    %4 = vector.extract_strided_slice %0 {offsets = [0, 3, 0], sizes = [8, 3, 16], strides = [1, 1, 1]} : vector<8x16x16xf32> to vector<8x3x16xf32>
    %cst_2 = arith.constant dense<0xFF800000> : vector<8x16xf32>
    %5 = vector.multi_reduction <maximumf>, %4, %cst_2 [1] : vector<8x3x16xf32> to vector<8x16xf32>
    %6 = vector.shape_cast %5 : vector<8x16xf32> to vector<8x1x16xf32>
    %7 = vector.extract_strided_slice %0 {offsets = [0, 6, 0], sizes = [8, 3, 16], strides = [1, 1, 1]} : vector<8x16x16xf32> to vector<8x3x16xf32>
    %cst_3 = arith.constant dense<0xFF800000> : vector<8x16xf32>
    %8 = vector.multi_reduction <maximumf>, %7, %cst_3 [1] : vector<8x3x16xf32> to vector<8x16xf32>
    %9 = vector.shape_cast %8 : vector<8x16xf32> to vector<8x1x16xf32>
    %10 = vector.extract_strided_slice %0 {offsets = [0, 9, 0], sizes = [8, 3, 16], strides = [1, 1, 1]} : vector<8x16x16xf32> to vector<8x3x16xf32>
    %cst_4 = arith.constant dense<0xFF800000> : vector<8x16xf32>
    %11 = vector.multi_reduction <maximumf>, %10, %cst_4 [1] : vector<8x3x16xf32> to vector<8x16xf32>
    %12 = vector.shape_cast %11 : vector<8x16xf32> to vector<8x1x16xf32>
    %13 = vector.extract_strided_slice %0 {offsets = [0, 12, 0], sizes = [8, 3, 16], strides = [1, 1, 1]} : vector<8x16x16xf32> to vector<8x3x16xf32>
    %cst_5 = arith.constant dense<0xFF800000> : vector<8x16xf32>
    %14 = vector.multi_reduction <maximumf>, %13, %cst_5 [1] : vector<8x3x16xf32> to vector<8x16xf32>
    %15 = vector.shape_cast %14 : vector<8x16xf32> to vector<8x1x16xf32>
    %16 = vector.extract_strided_slice %0 {offsets = [0, 15, 0], sizes = [8, 1, 16], strides = [1, 1, 1]} : vector<8x16x16xf32> to vector<8x1x16xf32>
    %cst_6 = arith.constant dense<0xFF800000> : vector<8x16xf32>
    %17 = vector.multi_reduction <maximumf>, %16, %cst_6 [1] : vector<8x1x16xf32> to vector<8x16xf32>
    %18 = vector.shape_cast %17 : vector<8x16xf32> to vector<8x1x16xf32>
    %19 = tpu.concatenate %3, %6, %9, %12, %15, %18 in 1 : vector<8x1x16xf32>, vector<8x1x16xf32>, vector<8x1x16xf32>, vector<8x1x16xf32>, vector<8x1x16xf32>, vector<8x1x16xf32> -> vector<8x6x16xf32>
    %20 = vector.extract_strided_slice %19 {offsets = [0, 0, 0], sizes = [8, 6, 3], strides = [1, 1, 1]} : vector<8x6x16xf32> to vector<8x6x3xf32>
    %cst_7 = arith.constant dense<0xFF800000> : vector<8x6xf32>
    %21 = vector.multi_reduction <maximumf>, %20, %cst_7 [2] : vector<8x6x3xf32> to vector<8x6xf32>
    %22 = vector.shape_cast %21 : vector<8x6xf32> to vector<8x6x1xf32>
    %23 = vector.extract_strided_slice %19 {offsets = [0, 0, 3], sizes = [8, 6, 3], strides = [1, 1, 1]} : vector<8x6x16xf32> to vector<8x6x3xf32>
    %cst_8 = arith.constant dense<0xFF800000> : vector<8x6xf32>
    %24 = vector.multi_reduction <maximumf>, %23, %cst_8 [2] : vector<8x6x3xf32> to vector<8x6xf32>
    %25 = vector.shape_cast %24 : vector<8x6xf32> to vector<8x6x1xf32>
    %26 = vector.extract_strided_slice %19 {offsets = [0, 0, 6], sizes = [8, 6, 3], strides = [1, 1, 1]} : vector<8x6x16xf32> to vector<8x6x3xf32>
    %cst_9 = arith.constant dense<0xFF800000> : vector<8x6xf32>
    %27 = vector.multi_reduction <maximumf>, %26, %cst_9 [2] : vector<8x6x3xf32> to vector<8x6xf32>
    %28 = vector.shape_cast %27 : vector<8x6xf32> to vector<8x6x1xf32>
    %29 = vector.extract_strided_slice %19 {offsets = [0, 0, 9], sizes = [8, 6, 3], strides = [1, 1, 1]} : vector<8x6x16xf32> to vector<8x6x3xf32>
    %cst_10 = arith.constant dense<0xFF800000> : vector<8x6xf32>
    %30 = vector.multi_reduction <maximumf>, %29, %cst_10 [2] : vector<8x6x3xf32> to vector<8x6xf32>
    %31 = vector.shape_cast %30 : vector<8x6xf32> to vector<8x6x1xf32>
    %32 = vector.extract_strided_slice %19 {offsets = [0, 0, 12], sizes = [8, 6, 3], strides = [1, 1, 1]} : vector<8x6x16xf32> to vector<8x6x3xf32>
    %cst_11 = arith.constant dense<0xFF800000> : vector<8x6xf32>
    %33 = vector.multi_reduction <maximumf>, %32, %cst_11 [2] : vector<8x6x3xf32> to vector<8x6xf32>
    %34 = vector.shape_cast %33 : vector<8x6xf32> to vector<8x6x1xf32>
    %35 = vector.extract_strided_slice %19 {offsets = [0, 0, 15], sizes = [8, 6, 1], strides = [1, 1, 1]} : vector<8x6x16xf32> to vector<8x6x1xf32>
    %cst_12 = arith.constant dense<0xFF800000> : vector<8x6xf32>
    %36 = vector.multi_reduction <maximumf>, %35, %cst_12 [2] : vector<8x6x1xf32> to vector<8x6xf32>
    %37 = vector.shape_cast %36 : vector<8x6xf32> to vector<8x6x1xf32>
    %38 = tpu.concatenate %22, %25, %28, %31, %34, %37 in 2 : vector<8x6x1xf32>, vector<8x6x1xf32>, vector<8x6x1xf32>, vector<8x6x1xf32>, vector<8x6x1xf32>, vector<8x6x1xf32> -> vector<8x6x6xf32>
    %c0_13 = arith.constant 0 : index
    %c0_14 = arith.constant 0 : index
    %c0_15 = arith.constant 0 : index
    %39 = vector.load %arg2[%c0_13, %c0_14, %c0_15] : memref<8x6x6xf32, #tpu.memory_space<vmem>>, vector<8x6x6xf32>
    tpu.vector_store %arg2[%c0_13, %c0_14, %c0_15], %38 {strides = array<i32>} : memref<8x6x6xf32, #tpu.memory_space<vmem>>, vector<8x6x6xf32>,
    return
  }
  func.func @transform_0(%arg0: i32) -> (i32, i32, i32) {
    %c0_i32 = arith.constant 0 : i32
    %c0_i32_0 = arith.constant 0 : i32
    %c0_i32_1 = arith.constant 0 : i32
    return %arg0, %c0_i32, %c0_i32_0 : i32, i32, i32
  }
  func.func @transform_1(%arg0: i32) -> (i32, i32, i32) {
    %c0_i32 = arith.constant 0 : i32
    %c0_i32_0 = arith.constant 0 : i32
    %c0_i32_1 = arith.constant 0 : i32
    return %arg0, %c0_i32, %c0_i32_0 : i32, i32, i32
  }
}

</mosaic_0001>

<llo_original>
// kernel: tpu_custom_call.1
$region0: #{tpu_custom_call.1}
  #allocation0 [shape = 'u32[]', space=smem, size = 0x4, offset = 0x4, fixed_abs, tag = 'smem constant byte address 0x4 - core index']
  #allocation1 [shape = 'u32[144,128]{1,0:T(1,128)}', space=vmem, size = 0x12000, scoped, tag = 'internal scratch']
  %s0 = inlined_call_operand.hbm [shape: f32[8,16,16], index: 0, kind: input, shape index: {}]
  %s1 = inlined_call_operand.vmem [shape: f32[8,6,6], index: 1, kind: output, shape index: {}]
  %s2 = sld [smem:[#allocation0]]
  $region18: #{tpu_custom_call.1} parent=0
    _
  %s4 = ssub.s32 1, %s2
  %s5 = scalar_select 0, %s4, %s2
  $region1: #{tpu_custom_call.1} parent=0
    #allocation2 [shape = 'u8[65536]{0}', space=vmem, size = 0x10000, scoped, tag = 'input window, operand 0, single buffered']
    #allocation3 [shape = 's32[1]{0}', space=sflag, size = 0x4, scoped, tag = 'scoped memory for tpu_custom_call.1']
    %6 = vsyncpa [#allocation3], 0
    // Predicated region
    $region2: #{tpu_custom_call.1} parent=1 // pred_check
      _
    $region3: #{tpu_custom_call.1} parent=1 // pred_check_branch
      %8 = sbr.rel (0) target = $region5
    $region4: #{tpu_custom_call.1} parent=1 // pred_region
      %s10 = ssub.s32 2048, 2048
      %11 = vsyncadd [#allocation3], %s10
      %s12 = sshll.u32 [#allocation2], 4
      %s13 = int_to_ptr.vmem [resolvable:$true] %s12
      %18 = dma.hbm_to_vmem [thread:$0]  %s0, 2048, %s13, [#allocation3], 128, 128, 8
    $region5: #{tpu_custom_call.1} parent=1 // pred_fallthru
      _
    // Predicated region
    $region6: #{tpu_custom_call.1} parent=1 // pred_check
      _
    $region7: #{tpu_custom_call.1} parent=1 // pred_check_branch
      %20 = sbr.rel (0) target = $region9
    $region8: #{tpu_custom_call.1} parent=1 // pred_region
      %21 = dma.done [#allocation3], 2048
    $region9: #{tpu_custom_call.1} parent=1 // pred_fallthru
      _
    %v22 = vld [vmem:[#allocation2] sm:$0xff]
    %v23 = vld [vmem:[#allocation2 + $0x8] sm:$0xff]
    %v24 = vld [vmem:[#allocation2 + $0x10] sm:$0xff]
    %v25 = vld [vmem:[#allocation2 + $0x18] sm:$0xff]
    %v26 = vld [vmem:[#allocation2 + $0x20] sm:$0xff]
    %v27 = vld [vmem:[#allocation2 + $0x28] sm:$0xff]
    %v28 = vld [vmem:[#allocation2 + $0x30] sm:$0xff]
    %v29 = vld [vmem:[#allocation2 + $0x38] sm:$0xff]
    %v30 = vld [vmem:[#allocation2 + $0x40] sm:$0xff]
    %v31 = vld [vmem:[#allocation2 + $0x48] sm:$0xff]
    %v32 = vld [vmem:[#allocation2 + $0x50] sm:$0xff]
    %v33 = vld [vmem:[#allocation2 + $0x58] sm:$0xff]
    %v34 = vld [vmem:[#allocation2 + $0x60] sm:$0xff]
    %v35 = vld [vmem:[#allocation2 + $0x68] sm:$0xff]
    %v36 = vld [vmem:[#allocation2 + $0x70] sm:$0xff]
    %v37 = vld [vmem:[#allocation2 + $0x78] sm:$0xff]
    %vm38 = vcmask 124928
    %v39 = vsel %vm38, %v22, -inf
    %v40 = vrot.slane %v39, 4
    %v41 = vmax.f32 %v39, %v40
    %v42 = vrot.slane %v41, 2
    %v43 = vmax.f32 %v41, %v42
    %v44 = vrot.slane %v43, 1
    %v45 = vmax.f32 %v43, %v44
    %v46 = vsel %vm38, %v24, -inf
    %v47 = vrot.slane %v46, 4
    %v48 = vmax.f32 %v46, %v47
    %v49 = vrot.slane %v48, 2
    %v50 = vmax.f32 %v48, %v49
    %v51 = vrot.slane %v50, 1
    %v52 = vmax.f32 %v50, %v51
    %v53 = vsel %vm38, %v26, -inf
    %v54 = vrot.slane %v53, 4
    %v55 = vmax.f32 %v53, %v54
    %v56 = vrot.slane %v55, 2
    %v57 = vmax.f32 %v55, %v56
    %v58 = vrot.slane %v57, 1
    %v59 = vmax.f32 %v57, %v58
    %v60 = vsel %vm38, %v28, -inf
    %v61 = vrot.slane %v60, 4
    %v62 = vmax.f32 %v60, %v61
    %v63 = vrot.slane %v62, 2
    %v64 = vmax.f32 %v62, %v63
    %v65 = vrot.slane %v64, 1
    %v66 = vmax.f32 %v64, %v65
    %v67 = vsel %vm38, %v30, -inf
    %v68 = vrot.slane %v67, 4
    %v69 = vmax.f32 %v67, %v68
    %v70 = vrot.slane %v69, 2
    %v71 = vmax.f32 %v69, %v70
    %v72 = vrot.slane %v71, 1
    %v73 = vmax.f32 %v71, %v72
    %v74 = vsel %vm38, %v32, -inf
    %v75 = vrot.slane %v74, 4
    %v76 = vmax.f32 %v74, %v75
    %v77 = vrot.slane %v76, 2
    %v78 = vmax.f32 %v76, %v77
    %v79 = vrot.slane %v78, 1
    %v80 = vmax.f32 %v78, %v79
    %v81 = vsel %vm38, %v34, -inf
    %v82 = vrot.slane %v81, 4
    %v83 = vmax.f32 %v81, %v82
    %v84 = vrot.slane %v83, 2
    %v85 = vmax.f32 %v83, %v84
    %v86 = vrot.slane %v85, 1
    %v87 = vmax.f32 %v85, %v86
    %v88 = vsel %vm38, %v36, -inf
    %v89 = vrot.slane %v88, 4
    %v90 = vmax.f32 %v88, %v89
    %v91 = vrot.slane %v90, 2
    %v92 = vmax.f32 %v90, %v91
    %v93 = vrot.slane %v92, 1
    %v94 = vmax.f32 %v92, %v93
    %vm95 = vcmask 128003
    %v96 = vsel %vm95, %v22, -inf
    %v97 = vrot.slane %v96, 4
    %v98 = vmax.f32 %v96, %v97
    %v99 = vrot.slane %v98, 2
    %v100 = vmax.f32 %v98, %v99
    %v101 = vrot.slane %v100, 1
    %v102 = vmax.f32 %v100, %v101
    %v103 = vsel %vm95, %v24, -inf
    %v104 = vrot.slane %v103, 4
    %v105 = vmax.f32 %v103, %v104
    %v106 = vrot.slane %v105, 2
    %v107 = vmax.f32 %v105, %v106
    %v108 = vrot.slane %v107, 1
    %v109 = vmax.f32 %v107, %v108
    %v110 = vsel %vm95, %v26, -inf
    %v111 = vrot.slane %v110, 4
    %v112 = vmax.f32 %v110, %v111
    %v113 = vrot.slane %v112, 2
    %v114 = vmax.f32 %v112, %v113
    %v115 = vrot.slane %v114, 1
    %v116 = vmax.f32 %v114, %v115
    %v117 = vsel %vm95, %v28, -inf
    %v118 = vrot.slane %v117, 4
    %v119 = vmax.f32 %v117, %v118
    %v120 = vrot.slane %v119, 2
    %v121 = vmax.f32 %v119, %v120
    %v122 = vrot.slane %v121, 1
    %v123 = vmax.f32 %v121, %v122
    %v124 = vsel %vm95, %v30, -inf
    %v125 = vrot.slane %v124, 4
    %v126 = vmax.f32 %v124, %v125
    %v127 = vrot.slane %v126, 2
    %v128 = vmax.f32 %v126, %v127
    %v129 = vrot.slane %v128, 1
    %v130 = vmax.f32 %v128, %v129
    %v131 = vsel %vm95, %v32, -inf
    %v132 = vrot.slane %v131, 4
    %v133 = vmax.f32 %v131, %v132
    %v134 = vrot.slane %v133, 2
    %v135 = vmax.f32 %v133, %v134
    %v136 = vrot.slane %v135, 1
    %v137 = vmax.f32 %v135, %v136
    %v138 = vsel %vm95, %v34, -inf
    %v139 = vrot.slane %v138, 4
    %v140 = vmax.f32 %v138, %v139
    %v141 = vrot.slane %v140, 2
    %v142 = vmax.f32 %v140, %v141
    %v143 = vrot.slane %v142, 1
    %v144 = vmax.f32 %v142, %v143
    %v145 = vsel %vm95, %v36, -inf
    %v146 = vrot.slane %v145, 4
    %v147 = vmax.f32 %v145, %v146
    %v148 = vrot.slane %v147, 2
    %v149 = vmax.f32 %v147, %v148
    %v150 = vrot.slane %v149, 1
    %v151 = vmax.f32 %v149, %v150
    %vm152 = vcmask 130054
    %v153 = vsel %vm152, %v22, -inf
    %vm154 = vcmask 122880
    %v155 = vsel %vm154, %v23, -inf
    %v156 = vmax.f32 %v153, %v155
    %v157 = vrot.slane %v156, 4
    %v158 = vmax.f32 %v156, %v157
    %v159 = vrot.slane %v158, 2
    %v160 = vmax.f32 %v158, %v159
    %v161 = vrot.slane %v160, 1
    %v162 = vmax.f32 %v160, %v161
    %v163 = vsel %vm152, %v24, -inf
    %v164 = vsel %vm154, %v25, -inf
    %v165 = vmax.f32 %v163, %v164
    %v166 = vrot.slane %v165, 4
    %v167 = vmax.f32 %v165, %v166
    %v168 = vrot.slane %v167, 2
    %v169 = vmax.f32 %v167, %v168
    %v170 = vrot.slane %v169, 1
    %v171 = vmax.f32 %v169, %v170
    %v172 = vsel %vm152, %v26, -inf
    %v173 = vsel %vm154, %v27, -inf
    %v174 = vmax.f32 %v172, %v173
    %v175 = vrot.slane %v174, 4
    %v176 = vmax.f32 %v174, %v175
    %v177 = vrot.slane %v176, 2
    %v178 = vmax.f32 %v176, %v177
    %v179 = vrot.slane %v178, 1
    %v180 = vmax.f32 %v178, %v179
    %v181 = vsel %vm152, %v28, -inf
    %v182 = vsel %vm154, %v29, -inf
    %v183 = vmax.f32 %v181, %v182
    %v184 = vrot.slane %v183, 4
    %v185 = vmax.f32 %v183, %v184
    %v186 = vrot.slane %v185, 2
    %v187 = vmax.f32 %v185, %v186
    %v188 = vrot.slane %v187, 1
    %v189 = vmax.f32 %v187, %v188
    %v190 = vsel %vm152, %v30, -inf
    %v191 = vsel %vm154, %v31, -inf
    %v192 = vmax.f32 %v190, %v191
    %v193 = vrot.slane %v192, 4
    %v194 = vmax.f32 %v192, %v193
    %v195 = vrot.slane %v194, 2
    %v196 = vmax.f32 %v194, %v195
    %v197 = vrot.slane %v196, 1
    %v198 = vmax.f32 %v196, %v197
    %v199 = vsel %vm152, %v32, -inf
    %v200 = vsel %vm154, %v33, -inf
    %v201 = vmax.f32 %v199, %v200
    %v202 = vrot.slane %v201, 4
    %v203 = vmax.f32 %v201, %v202
    %v204 = vrot.slane %v203, 2
    %v205 = vmax.f32 %v203, %v204
    %v206 = vrot.slane %v205, 1
    %v207 = vmax.f32 %v205, %v206
    %v208 = vsel %vm152, %v34, -inf
    %v209 = vsel %vm154, %v35, -inf
    %v210 = vmax.f32 %v208, %v209
    %v211 = vrot.slane %v210, 4
    %v212 = vmax.f32 %v210, %v211
    %v213 = vrot.slane %v212, 2
    %v214 = vmax.f32 %v212, %v213
    %v215 = vrot.slane %v214, 1
    %v216 = vmax.f32 %v214, %v215
    %v217 = vsel %vm152, %v36, -inf
    %v218 = vsel %vm154, %v37, -inf
    %v219 = vmax.f32 %v217, %v218
    %v220 = vrot.slane %v219, 4
    %v221 = vmax.f32 %v219, %v220
    %v222 = vrot.slane %v221, 2
    %v223 = vmax.f32 %v221, %v222
    %v224 = vrot.slane %v223, 1
    %v225 = vmax.f32 %v223, %v224
    %vm226 = vcmask 125953
    %v227 = vsel %vm226, %v23, -inf
    %v228 = vrot.slane %v227, 4
    %v229 = vmax.f32 %v227, %v228
    %v230 = vrot.slane %v229, 2
    %v231 = vmax.f32 %v229, %v230
    %v232 = vrot.slane %v231, 1
    %v233 = vmax.f32 %v231, %v232
    %v234 = vsel %vm226, %v25, -inf
    %v235 = vrot.slane %v234, 4
    %v236 = vmax.f32 %v234, %v235
    %v237 = vrot.slane %v236, 2
    %v238 = vmax.f32 %v236, %v237
    %v239 = vrot.slane %v238, 1
    %v240 = vmax.f32 %v238, %v239
    %v241 = vsel %vm226, %v27, -inf
    %v242 = vrot.slane %v241, 4
    %v243 = vmax.f32 %v241, %v242
    %v244 = vrot.slane %v243, 2
    %v245 = vmax.f32 %v243, %v244
    %v246 = vrot.slane %v245, 1
    %v247 = vmax.f32 %v245, %v246
    %v248 = vsel %vm226, %v29, -inf
    %v249 = vrot.slane %v248, 4
    %v250 = vmax.f32 %v248, %v249
    %v251 = vrot.slane %v250, 2
    %v252 = vmax.f32 %v250, %v251
    %v253 = vrot.slane %v252, 1
    %v254 = vmax.f32 %v252, %v253
    %v255 = vsel %vm226, %v31, -inf
    %v256 = vrot.slane %v255, 4
    %v257 = vmax.f32 %v255, %v256
    %v258 = vrot.slane %v257, 2
    %v259 = vmax.f32 %v257, %v258
    %v260 = vrot.slane %v259, 1
    %v261 = vmax.f32 %v259, %v260
    %v262 = vsel %vm226, %v33, -inf
    %v263 = vrot.slane %v262, 4
    %v264 = vmax.f32 %v262, %v263
    %v265 = vrot.slane %v264, 2
    %v266 = vmax.f32 %v264, %v265
    %v267 = vrot.slane %v266, 1
    %v268 = vmax.f32 %v266, %v267
    %v269 = vsel %vm226, %v35, -inf
    %v270 = vrot.slane %v269, 4
    %v271 = vmax.f32 %v269, %v270
    %v272 = vrot.slane %v271, 2
    %v273 = vmax.f32 %v271, %v272
    %v274 = vrot.slane %v273, 1
    %v275 = vmax.f32 %v273, %v274
    %v276 = vsel %vm226, %v37, -inf
    %v277 = vrot.slane %v276, 4
    %v278 = vmax.f32 %v276, %v277
    %v279 = vrot.slane %v278, 2
    %v280 = vmax.f32 %v278, %v279
    %v281 = vrot.slane %v280, 1
    %v282 = vmax.f32 %v280, %v281
    %vm283 = vcmask 129028
    %v284 = vsel %vm283, %v23, -inf
    %v285 = vrot.slane %v284, 4
    %v286 = vmax.f32 %v284, %v285
    %v287 = vrot.slane %v286, 2
    %v288 = vmax.f32 %v286, %v287
    %v289 = vrot.slane %v288, 1
    %v290 = vmax.f32 %v288, %v289
    %v291 = vsel %vm283, %v25, -inf
    %v292 = vrot.slane %v291, 4
    %v293 = vmax.f32 %v291, %v292
    %v294 = vrot.slane %v293, 2
    %v295 = vmax.f32 %v293, %v294
    %v296 = vrot.slane %v295, 1
    %v297 = vmax.f32 %v295, %v296
    %v298 = vsel %vm283, %v27, -inf
    %v299 = vrot.slane %v298, 4
    %v300 = vmax.f32 %v298, %v299
    %v301 = vrot.slane %v300, 2
    %v302 = vmax.f32 %v300, %v301
    %v303 = vrot.slane %v302, 1
    %v304 = vmax.f32 %v302, %v303
    %v305 = vsel %vm283, %v29, -inf
    %v306 = vrot.slane %v305, 4
    %v307 = vmax.f32 %v305, %v306
    %v308 = vrot.slane %v307, 2
    %v309 = vmax.f32 %v307, %v308
    %v310 = vrot.slane %v309, 1
    %v311 = vmax.f32 %v309, %v310
    %v312 = vsel %vm283, %v31, -inf
    %v313 = vrot.slane %v312, 4
    %v314 = vmax.f32 %v312, %v313
    %v315 = vrot.slane %v314, 2
    %v316 = vmax.f32 %v314, %v315
    %v317 = vrot.slane %v316, 1
    %v318 = vmax.f32 %v316, %v317
    %v319 = vsel %vm283, %v33, -inf
    %v320 = vrot.slane %v319, 4
    %v321 = vmax.f32 %v319, %v320
    %v322 = vrot.slane %v321, 2
    %v323 = vmax.f32 %v321, %v322
    %v324 = vrot.slane %v323, 1
    %v325 = vmax.f32 %v323, %v324
    %v326 = vsel %vm283, %v35, -inf
    %v327 = vrot.slane %v326, 4
    %v328 = vmax.f32 %v326, %v327
    %v329 = vrot.slane %v328, 2
    %v330 = vmax.f32 %v328, %v329
    %v331 = vrot.slane %v330, 1
    %v332 = vmax.f32 %v330, %v331
    %v333 = vsel %vm283, %v37, -inf
    %v334 = vrot.slane %v333, 4
    %v335 = vmax.f32 %v333, %v334
    %v336 = vrot.slane %v335, 2
    %v337 = vmax.f32 %v335, %v336
    %v338 = vrot.slane %v337, 1
    %v339 = vmax.f32 %v337, %v338
    %v348 = vrot.slane %v23, 2
    %v349 = vrot.slane %v25, 2
    %v350 = vrot.slane %v27, 2
    %v351 = vrot.slane %v29, 2
    %v352 = vrot.slane %v31, 2
    %v353 = vrot.slane %v33, 2
    %v354 = vrot.slane %v35, 2
    %v355 = vrot.slane %v37, 2
    %vm364 = vcmask 1040384
    %v365 = vsel %vm364, %v45, %v102
    %v366 = vsel %vm364, %v52, %v109
    %v367 = vsel %vm364, %v59, %v116
    %v368 = vsel %vm364, %v66, %v123
    %v369 = vsel %vm364, %v73, %v130
    %v370 = vsel %vm364, %v80, %v137
    %v371 = vsel %vm364, %v87, %v144
    %v372 = vsel %vm364, %v94, %v151
    %vm373 = vcmask 1041408
    %v374 = vsel %vm373, %v365, %v162
    %v375 = vsel %vm373, %v366, %v171
    %v376 = vsel %vm373, %v367, %v180
    %v377 = vsel %vm373, %v368, %v189
    %v378 = vsel %vm373, %v369, %v198
    %v379 = vsel %vm373, %v370, %v207
    %v380 = vsel %vm373, %v371, %v216
    %v381 = vsel %vm373, %v372, %v225
    %vm382 = vcmask 1042432
    %v383 = vsel %vm382, %v374, %v233
    %v384 = vsel %vm382, %v375, %v240
    %v385 = vsel %vm382, %v376, %v247
    %v386 = vsel %vm382, %v377, %v254
    %v387 = vsel %vm382, %v378, %v261
    %v388 = vsel %vm382, %v379, %v268
    %v389 = vsel %vm382, %v380, %v275
    %v390 = vsel %vm382, %v381, %v282
    %vm391 = vcmask 1043456
    %v392 = vsel %vm391, %v383, %v290
    %v393 = vsel %vm391, %v384, %v297
    %v394 = vsel %vm391, %v385, %v304
    %v395 = vsel %vm391, %v386, %v311
    %v396 = vsel %vm391, %v387, %v318
    %v397 = vsel %vm391, %v388, %v325
    %v398 = vsel %vm391, %v389, %v332
    %v399 = vsel %vm391, %v390, %v339
    %vm400 = vcmask 1044480
    %v401 = vsel %vm400, %v392, %v348
    %v402 = vsel %vm400, %v393, %v349
    %v403 = vsel %vm400, %v394, %v350
    %v404 = vsel %vm400, %v395, %v351
    %v405 = vsel %vm400, %v396, %v352
    %v406 = vsel %vm400, %v397, %v353
    %v407 = vsel %vm400, %v398, %v354
    %v408 = vsel %vm400, %v399, %v355
    %vm409 = vcmask 21504
    %v410 = vsel %vm409, %v401, -inf
    %411 = vmax.xlane.f32.xlu0 %v410
    %v412 = vpop.xlane.xlu0 %411
    %v413 = vsel %vm409, %v402, -inf
    %414 = vmax.xlane.f32.xlu0 %v413
    %v415 = vpop.xlane.xlu0 %414
    %v416 = vsel %vm409, %v403, -inf
    %417 = vmax.xlane.f32.xlu0 %v416
    %v418 = vpop.xlane.xlu0 %417
    %v419 = vsel %vm409, %v404, -inf
    %420 = vmax.xlane.f32.xlu0 %v419
    %v421 = vpop.xlane.xlu0 %420
    %v422 = vsel %vm409, %v405, -inf
    %423 = vmax.xlane.f32.xlu0 %v422
    %v424 = vpop.xlane.xlu0 %423
    %v425 = vsel %vm409, %v406, -inf
    %426 = vmax.xlane.f32.xlu0 %v425
    %v427 = vpop.xlane.xlu0 %426
    %v428 = vsel %vm409, %v407, -inf
    %429 = vmax.xlane.f32.xlu0 %v428
    %v430 = vpop.xlane.xlu0 %429
    %v431 = vsel %vm409, %v408, -inf
    %432 = vmax.xlane.f32.xlu0 %v431
    %v433 = vpop.xlane.xlu0 %432
    %vm434 = vcmask 46104
    %v435 = vsel %vm434, %v401, -inf
    %436 = vmax.xlane.f32.xlu0 %v435
    %v437 = vpop.xlane.xlu0 %436
    %v438 = vsel %vm434, %v402, -inf
    %439 = vmax.xlane.f32.xlu0 %v438
    %v440 = vpop.xlane.xlu0 %439
    %v441 = vsel %vm434, %v403, -inf
    %442 = vmax.xlane.f32.xlu0 %v441
    %v443 = vpop.xlane.xlu0 %442
    %v444 = vsel %vm434, %v404, -inf
    %445 = vmax.xlane.f32.xlu0 %v444
    %v446 = vpop.xlane.xlu0 %445
    %v447 = vsel %vm434, %v405, -inf
    %448 = vmax.xlane.f32.xlu0 %v447
    %v449 = vpop.xlane.xlu0 %448
    %v450 = vsel %vm434, %v406, -inf
    %451 = vmax.xlane.f32.xlu0 %v450
    %v452 = vpop.xlane.xlu0 %451
    %v453 = vsel %vm434, %v407, -inf
    %454 = vmax.xlane.f32.xlu0 %v453
    %v455 = vpop.xlane.xlu0 %454
    %v456 = vsel %vm434, %v408, -inf
    %457 = vmax.xlane.f32.xlu0 %v456
    %v458 = vpop.xlane.xlu0 %457
    %vm459 = vcmask 70704
    %v460 = vsel %vm459, %v401, -inf
    %461 = vmax.xlane.f32.xlu0 %v460
    %v462 = vpop.xlane.xlu0 %461
    %v463 = vsel %vm459, %v402, -inf
    %464 = vmax.xlane.f32.xlu0 %v463
    %v465 = vpop.xlane.xlu0 %464
    %v466 = vsel %vm459, %v403, -inf
    %467 = vmax.xlane.f32.xlu0 %v466
    %v468 = vpop.xlane.xlu0 %467
    %v469 = vsel %vm459, %v404, -inf
    %470 = vmax.xlane.f32.xlu0 %v469
    %v471 = vpop.xlane.xlu0 %470
    %v472 = vsel %vm459, %v405, -inf
    %473 = vmax.xlane.f32.xlu0 %v472
    %v474 = vpop.xlane.xlu0 %473
    %v475 = vsel %vm459, %v406, -inf
    %476 = vmax.xlane.f32.xlu0 %v475
    %v477 = vpop.xlane.xlu0 %476
    %v478 = vsel %vm459, %v407, -inf
    %479 = vmax.xlane.f32.xlu0 %v478
    %v480 = vpop.xlane.xlu0 %479
    %v481 = vsel %vm459, %v408, -inf
    %482 = vmax.xlane.f32.xlu0 %v481
    %v483 = vpop.xlane.xlu0 %482
    %vm484 = vcmask 95304
    %v485 = vsel %vm484, %v401, -inf
    %486 = vmax.xlane.f32.xlu0 %v485
    %v487 = vpop.xlane.xlu0 %486
    %v488 = vsel %vm484, %v402, -inf
    %489 = vmax.xlane.f32.xlu0 %v488
    %v490 = vpop.xlane.xlu0 %489
    %v491 = vsel %vm484, %v403, -inf
    %492 = vmax.xlane.f32.xlu0 %v491
    %v493 = vpop.xlane.xlu0 %492
    %v494 = vsel %vm484, %v404, -inf
    %495 = vmax.xlane.f32.xlu0 %v494
    %v496 = vpop.xlane.xlu0 %495
    %v497 = vsel %vm484, %v405, -inf
    %498 = vmax.xlane.f32.xlu0 %v497
    %v499 = vpop.xlane.xlu0 %498
    %v500 = vsel %vm484, %v406, -inf
    %501 = vmax.xlane.f32.xlu0 %v500
    %v502 = vpop.xlane.xlu0 %501
    %v503 = vsel %vm484, %v407, -inf
    %504 = vmax.xlane.f32.xlu0 %v503
    %v505 = vpop.xlane.xlu0 %504
    %v506 = vsel %vm484, %v408, -inf
    %507 = vmax.xlane.f32.xlu0 %v506
    %v508 = vpop.xlane.xlu0 %507
    %vm509 = vcmask 119904
    %v510 = vsel %vm509, %v401, -inf
    %511 = vmax.xlane.f32.xlu0 %v510
    %v512 = vpop.xlane.xlu0 %511
    %v513 = vsel %vm509, %v402, -inf
    %514 = vmax.xlane.f32.xlu0 %v513
    %v515 = vpop.xlane.xlu0 %514
    %v516 = vsel %vm509, %v403, -inf
    %517 = vmax.xlane.f32.xlu0 %v516
    %v518 = vpop.xlane.xlu0 %517
    %v519 = vsel %vm509, %v404, -inf
    %520 = vmax.xlane.f32.xlu0 %v519
    %v521 = vpop.xlane.xlu0 %520
    %v522 = vsel %vm509, %v405, -inf
    %523 = vmax.xlane.f32.xlu0 %v522
    %v524 = vpop.xlane.xlu0 %523
    %v525 = vsel %vm509, %v406, -inf
    %526 = vmax.xlane.f32.xlu0 %v525
    %v527 = vpop.xlane.xlu0 %526
    %v528 = vsel %vm509, %v407, -inf
    %529 = vmax.xlane.f32.xlu0 %v528
    %v530 = vpop.xlane.xlu0 %529
    %v531 = vsel %vm509, %v408, -inf
    %532 = vmax.xlane.f32.xlu0 %v531
    %v533 = vpop.xlane.xlu0 %532
    %542 = vrot.lane.b32.xlu0 %v401, 118
    %v543 = vpop.permute.xlu0 %542
    %544 = vrot.lane.b32.xlu0 %v402, 118
    %v545 = vpop.permute.xlu0 %544
    %546 = vrot.lane.b32.xlu0 %v403, 118
    %v547 = vpop.permute.xlu0 %546
    %548 = vrot.lane.b32.xlu0 %v404, 118
    %v549 = vpop.permute.xlu0 %548
    %550 = vrot.lane.b32.xlu0 %v405, 118
    %v551 = vpop.permute.xlu0 %550
    %552 = vrot.lane.b32.xlu0 %v406, 118
    %v553 = vpop.permute.xlu0 %552
    %554 = vrot.lane.b32.xlu0 %v407, 118
    %v555 = vpop.permute.xlu0 %554
    %556 = vrot.lane.b32.xlu0 %v408, 118
    %v557 = vpop.permute.xlu0 %556
    %vm566 = vcmask 7168
    %v567 = vsel %vm566, %v412, %v437
    %v568 = vsel %vm566, %v415, %v440
    %v569 = vsel %vm566, %v418, %v443
    %v570 = vsel %vm566, %v421, %v446
    %v571 = vsel %vm566, %v424, %v449
    %v572 = vsel %vm566, %v427, %v452
    %v573 = vsel %vm566, %v430, %v455
    %v574 = vsel %vm566, %v433, %v458
    %vm575 = vcmask 15360
    %v576 = vsel %vm575, %v567, %v462
    %v577 = vsel %vm575, %v568, %v465
    %v578 = vsel %vm575, %v569, %v468
    %v579 = vsel %vm575, %v570, %v471
    %v580 = vsel %vm575, %v571, %v474
    %v581 = vsel %vm575, %v572, %v477
    %v582 = vsel %vm575, %v573, %v480
    %v583 = vsel %vm575, %v574, %v483
    %vm584 = vcmask 23552
    %v585 = vsel %vm584, %v576, %v487
    %v586 = vsel %vm584, %v577, %v490
    %v587 = vsel %vm584, %v578, %v493
    %v588 = vsel %vm584, %v579, %v496
    %v589 = vsel %vm584, %v580, %v499
    %v590 = vsel %vm584, %v581, %v502
    %v591 = vsel %vm584, %v582, %v505
    %v592 = vsel %vm584, %v583, %v508
    %vm593 = vcmask 31744
    %v594 = vsel %vm593, %v585, %v512
    %v595 = vsel %vm593, %v586, %v515
    %v596 = vsel %vm593, %v587, %v518
    %v597 = vsel %vm593, %v588, %v521
    %v598 = vsel %vm593, %v589, %v524
    %v599 = vsel %vm593, %v590, %v527
    %v600 = vsel %vm593, %v591, %v530
    %v601 = vsel %vm593, %v592, %v533
    %vm602 = vcmask 39936
    %v603 = vsel %vm602, %v594, %v543
    %v604 = vsel %vm602, %v595, %v545
    %v605 = vsel %vm602, %v596, %v547
    %v606 = vsel %vm602, %v597, %v549
    %v607 = vsel %vm602, %v598, %v551
    %v608 = vsel %vm602, %v599, %v553
    %v609 = vsel %vm602, %v600, %v555
    %v610 = vsel %vm602, %v601, %v557
    %vm611 = vcmask 46080
    %612 = vst.msk [vmem:[%s1] sm:$0x3f] %vm611, %v603
    %613 = vst.msk [vmem:[%s1 + $0x8] sm:$0x3f] %vm611, %v604
    %614 = vst.msk [vmem:[%s1 + $0x10] sm:$0x3f] %vm611, %v605
    %615 = vst.msk [vmem:[%s1 + $0x18] sm:$0x3f] %vm611, %v606
    %616 = vst.msk [vmem:[%s1 + $0x20] sm:$0x3f] %vm611, %v607
    %617 = vst.msk [vmem:[%s1 + $0x28] sm:$0x3f] %vm611, %v608
    %618 = vst.msk [vmem:[%s1 + $0x30] sm:$0x3f] %vm611, %v609
    %619 = vst.msk [vmem:[%s1 + $0x38] sm:$0x3f] %vm611, %v610
    // Predicated region
    $region10: #{tpu_custom_call.1} parent=1 // pred_check
      _
    $region11: #{tpu_custom_call.1} parent=1 // pred_check_branch
      %621 = sbr.rel (0) target = $region13
    $region12: #{tpu_custom_call.1} parent=1 // pred_region
      _
    $region13: #{tpu_custom_call.1} parent=1 // pred_fallthru
      _
    // Predicated region
    $region14: #{tpu_custom_call.1} parent=1 // pred_check
      _
    $region15: #{tpu_custom_call.1} parent=1 // pred_check_branch
      %623 = sbr.rel (0) target = $region17
    $region16: #{tpu_custom_call.1} parent=1 // pred_region
      _
    $region17: #{tpu_custom_call.1} parent=1 // pred_fallthru
      _
    %624 = vsyncpa [#allocation3], 1

</llo_original>
